<compile_context>
chip_gen: v7x
topology: tpu7x:2x2x1
jax: 0.10.0
libtpu: 0.0.40
codegen_flags: <defaults>
</compile_context>

<pallas_src>
import functools

import jax
import jax.numpy as jnp
from jax.experimental import pallas as pl
from jax.experimental.pallas import tpu as pltpu

INPUT_NODES = 2
HIDDEN_NODES = 20
OUTPUT_NODES = 1


def classify_moons_kernel(x_ref, w1_ref, b1_ref, w2_ref, b2_ref, o_ref, *,
                          layer1_dtype):
    # x_ref : (2, TB)   batch on lanes (lane-dense)
    # w1_ref: (20, 2)   torch layout (out, in), resident across the grid
    # b1_ref: (20, 1)   resident
    # w2_ref: (20, 1)   torch W2 transposed, resident
    # b2_ref: (1, 1)    resident
    # o_ref : (1, TB)   lane-dense output block
    x = x_ref[...].astype(layer1_dtype)                 # (2, TB)
    w1 = w1_ref[...].astype(layer1_dtype)               # (20, 2)
    b1 = b1_ref[...].astype(layer1_dtype)               # (20, 1)

    x0 = x[0:1, :]                                      # (1, TB)
    x1 = x[1:2, :]                                      # (1, TB)

    # Layer 1 on the VPU: two broadcast multiply-adds per hidden row, bias
    # fused into the accumulation chain.
    h = w1[:, 0:1] * x0 + (w1[:, 1:2] * x1 + b1)        # (20, TB)
    h = jnp.maximum(h, 0.0).astype(jnp.float32)         # ReLU, f32 for layer 2

    # Layer 2: per-lane weighted sum over the 20 hidden sublane rows (XLU
    # reduction), accumulated in f32, plus a single scalar bias.
    out = jnp.sum(w2_ref[...] * h, axis=0, keepdims=True) + b2_ref[...]  # (1, TB)
    o_ref[...] = out.astype(o_ref.dtype)


def classify_moons_forward(x, w1, b1, w2, b2, *, tile_b=32768,
                           layer1_dtype=jnp.float32):
    """x: [B, 2] f32, w1: [20, 2], b1: [20], w2: [1, 20], b2: [1] -> [B, 1] f32."""
    B = x.shape[0]

    # Lane-dense batch tile: sanitize to a multiple of 128 and clamp to the
    # (lane-rounded) batch so a single tile never exceeds what is needed.
    b_ceil = ((max(B, 1) + 127) // 128) * 128
    tb = max(128, (min(tile_b, b_ceil) // 128) * 128)
    # Keep >= 2 grid steps when there is enough batch, so v7x can shard the
    # grid across both TensorCores (no-op on single-TC v5e/v6e).
    if b_ceil < 2 * tb and b_ceil >= 256:
        tb = max(128, ((b_ceil // 2) // 128) * 128)

    grid = (pl.cdiv(B, tb),)

    # Lane-dense layout: batch on the last axis.  No padding -- the ragged
    # last block is handled by Pallas (output write-back is masked).
    # TODO(synk): for B % 64 == 0 callers, x could stay [B,2] in HBM and be
    # deinterleaved in-kernel to also drop this one transpose pass.
    x_t = x.T                                            # (2, B)
    b1_r = b1.reshape(HIDDEN_NODES, 1)                   # (20, 1)
    w2_r = w2.T                                          # (20, 1)
    b2_r = b2.reshape(1, 1)                              # (1, 1)

    kernel = functools.partial(classify_moons_kernel, layer1_dtype=layer1_dtype)

    out_t = pl.pallas_call(
        kernel,
        out_shape=jax.ShapeDtypeStruct((OUTPUT_NODES, B), jnp.float32),
        grid=grid,
        in_specs=[
            pl.BlockSpec((INPUT_NODES, tb), lambda i: (0, i)),            # x tile
            pl.BlockSpec((HIDDEN_NODES, INPUT_NODES), lambda i: (0, 0)),  # W1 resident
            pl.BlockSpec((HIDDEN_NODES, 1), lambda i: (0, 0)),            # b1 resident
            pl.BlockSpec((HIDDEN_NODES, 1), lambda i: (0, 0)),            # W2^T resident
            pl.BlockSpec((1, 1), lambda i: (0, 0)),                       # b2 resident
        ],
        out_specs=pl.BlockSpec((OUTPUT_NODES, tb), lambda i: (0, i)),
        compiler_params=pltpu.CompilerParams(
            dimension_semantics=("parallel",),
        ),
    )(x_t, w1, b1_r, w2_r, b2_r)

    # Free bitcast-level reshape back to PyTorch layout [B, 1].
    return out_t.reshape(B, OUTPUT_NODES)


def init_params(key):
    """PyTorch Linear default init: U[-1/sqrt(fan_in), 1/sqrt(fan_in)], torch layouts."""
    k1, k2, k3, k4 = jax.random.split(key, 4)
    bound1 = 1.0 / jnp.sqrt(jnp.float32(INPUT_NODES))
    bound2 = 1.0 / jnp.sqrt(jnp.float32(HIDDEN_NODES))
    w1 = jax.random.uniform(k1, (HIDDEN_NODES, INPUT_NODES), jnp.float32,
                            minval=-bound1, maxval=bound1)   # torch: (out, in)
    b1 = jax.random.uniform(k2, (HIDDEN_NODES,), jnp.float32,
                            minval=-bound1, maxval=bound1)
    w2 = jax.random.uniform(k3, (OUTPUT_NODES, HIDDEN_NODES), jnp.float32,
                            minval=-bound2, maxval=bound2)   # torch: (out, in)
    b2 = jax.random.uniform(k4, (OUTPUT_NODES,), jnp.float32,
                            minval=-bound2, maxval=bound2)
    return w1, b1, w2, b2


if __name__ == "__main__":
    key = jax.random.PRNGKey(0)
    pkey, xkey, xkey2 = jax.random.split(key, 3)
    w1, b1, w2, b2 = init_params(pkey)

    def ref_fn(xs):
        return jnp.maximum(xs @ w1.T + b1, 0.0) @ w2.T + b2

    # Small batch: single (partial) grid step.
    batch = 8
    x = jax.random.normal(xkey, (batch, INPUT_NODES), jnp.float32)
    out = jax.block_until_ready(classify_moons_forward(x, w1, b1, w2, b2))
    assert out.shape == (batch, OUTPUT_NODES)
    assert jnp.allclose(out, ref_fn(x), atol=1e-5, rtol=1e-5)

    # Slightly larger batch: exercises the multi-step grid + ragged last block.
    batch2 = 300
    x2 = jax.random.normal(xkey2, (batch2, INPUT_NODES), jnp.float32)
    out2 = jax.block_until_ready(classify_moons_forward(x2, w1, b1, w2, b2))
    assert out2.shape == (batch2, OUTPUT_NODES)
    assert jnp.allclose(out2, ref_fn(x2), atol=1e-5, rtol=1e-5)

    print("KERNEL_OK")
</pallas_src>

<mosaic_0001>
module attributes {stable_mosaic.version = 11 : i64} {
  func.func @classify_moons_kernel(%arg0: i32, %arg1: memref<2x128xf32, #tpu.memory_space<vmem>>, %arg2: memref<20x2xf32, #tpu.memory_space<vmem>>, %arg3: memref<20x1xf32, #tpu.memory_space<vmem>>, %arg4: memref<20x1xf32, #tpu.memory_space<vmem>>, %arg5: memref<1x1xf32, #tpu.memory_space<vmem>>, %arg6: memref<1x128xf32, #tpu.memory_space<vmem>>) attributes {dimension_semantics = [#tpu.dimension_semantics<parallel>], iteration_bounds = array<i64: 1>, scalar_prefetch = 0 : i64, scratch_operands = 0 : i64, tpu.core_type = #tpu.core_type<tc>, window_params = [{transform_indices = @transform_0, window_bounds = array<i64: 2, 128>}, {pipeline_mode = #tpu.pipeline_mode<synchronous>, transform_indices = @transform_1, window_bounds = array<i64: 20, 2>}, {pipeline_mode = #tpu.pipeline_mode<synchronous>, transform_indices = @transform_2, window_bounds = array<i64: 20, 1>}, {pipeline_mode = #tpu.pipeline_mode<synchronous>, transform_indices = @transform_3, window_bounds = array<i64: 20, 1>}, {pipeline_mode = #tpu.pipeline_mode<synchronous>, transform_indices = @transform_4, window_bounds = array<i64: 1, 1>}, {transform_indices = @transform_5, window_bounds = array<i64: 1, 128>}]} {
    %c0 = arith.constant 0 : index
    %c0_0 = arith.constant 0 : index
    %0 = vector.load %arg1[%c0, %c0_0] : memref<2x128xf32, #tpu.memory_space<vmem>>, vector<2x128xf32>
    %c0_1 = arith.constant 0 : index
    %c0_2 = arith.constant 0 : index
    %1 = vector.load %arg2[%c0_1, %c0_2] : memref<20x2xf32, #tpu.memory_space<vmem>>, vector<20x2xf32>
    %c0_3 = arith.constant 0 : index
    %c0_4 = arith.constant 0 : index
    %2 = vector.load %arg3[%c0_3, %c0_4] : memref<20x1xf32, #tpu.memory_space<vmem>>, vector<20x1xf32>
    %3 = vector.extract_strided_slice %0 {offsets = [0, 0], sizes = [1, 128], strides = [1, 1]} : vector<2x128xf32> to vector<1x128xf32>
    %4 = vector.extract_strided_slice %0 {offsets = [1, 0], sizes = [1, 128], strides = [1, 1]} : vector<2x128xf32> to vector<1x128xf32>
    %5 = vector.extract_strided_slice %1 {offsets = [0, 0], sizes = [20, 1], strides = [1, 1]} : vector<20x2xf32> to vector<20x1xf32>
    %6 = vector.broadcast %5 : vector<20x1xf32> to vector<20x128xf32>
    %7 = vector.broadcast %3 : vector<1x128xf32> to vector<20x128xf32>
    %8 = arith.mulf %6, %7 : vector<20x128xf32>
    %9 = vector.extract_strided_slice %1 {offsets = [0, 1], sizes = [20, 1], strides = [1, 1]} : vector<20x2xf32> to vector<20x1xf32>
    %10 = vector.broadcast %9 : vector<20x1xf32> to vector<20x128xf32>
    %11 = vector.broadcast %4 : vector<1x128xf32> to vector<20x128xf32>
    %12 = arith.mulf %10, %11 : vector<20x128xf32>
    %13 = vector.broadcast %2 : vector<20x1xf32> to vector<20x128xf32>
    %14 = arith.addf %12, %13 : vector<20x128xf32>
    %15 = arith.addf %8, %14 : vector<20x128xf32>
    %cst = arith.constant 0.000000e+00 : f32
    %16 = vector.broadcast %cst : f32 to vector<20x128xf32>
    %17 = arith.maximumf %15, %16 : vector<20x128xf32>
    %c0_5 = arith.constant 0 : index
    %c0_6 = arith.constant 0 : index
    %18 = vector.load %arg4[%c0_5, %c0_6] : memref<20x1xf32, #tpu.memory_space<vmem>>, vector<20x1xf32>
    %19 = vector.broadcast %18 : vector<20x1xf32> to vector<20x128xf32>
    %20 = arith.mulf %19, %17 : vector<20x128xf32>
    %cst_7 = arith.constant dense<0.000000e+00> : vector<128xf32>
    %21 = vector.multi_reduction <add>, %20, %cst_7 [0] : vector<20x128xf32> to vector<128xf32>
    %22 = vector.shape_cast %21 : vector<128xf32> to vector<1x128xf32>
    %c0_8 = arith.constant 0 : index
    %c0_9 = arith.constant 0 : index
    %23 = vector.load %arg5[%c0_8, %c0_9] : memref<1x1xf32, #tpu.memory_space<vmem>>, vector<1x1xf32>
    %24 = vector.broadcast %23 : vector<1x1xf32> to vector<1x128xf32>
    %25 = arith.addf %22, %24 : vector<1x128xf32>
    %c0_10 = arith.constant 0 : index
    %c0_11 = arith.constant 0 : index
    %26 = vector.load %arg6[%c0_10, %c0_11] : memref<1x128xf32, #tpu.memory_space<vmem>>, vector<1x128xf32>
    tpu.vector_store %arg6[%c0_10, %c0_11], %25 {strides = array<i32>} : memref<1x128xf32, #tpu.memory_space<vmem>>, vector<1x128xf32>,
    return
  }
  func.func @transform_0(%arg0: i32) -> (i32, i32) {
    %c0_i32 = arith.constant 0 : i32
    %c0_i32_0 = arith.constant 0 : i32
    return %c0_i32, %arg0 : i32, i32
  }
  func.func @transform_1(%arg0: i32) -> (i32, i32) {
    %c0_i32 = arith.constant 0 : i32
    %c0_i32_0 = arith.constant 0 : i32
    %c0_i32_1 = arith.constant 0 : i32
    return %c0_i32, %c0_i32_0 : i32, i32
  }
  func.func @transform_2(%arg0: i32) -> (i32, i32) {
    %c0_i32 = arith.constant 0 : i32
    %c0_i32_0 = arith.constant 0 : i32
    %c0_i32_1 = arith.constant 0 : i32
    return %c0_i32, %c0_i32_0 : i32, i32
  }
  func.func @transform_3(%arg0: i32) -> (i32, i32) {
    %c0_i32 = arith.constant 0 : i32
    %c0_i32_0 = arith.constant 0 : i32
    %c0_i32_1 = arith.constant 0 : i32
    return %c0_i32, %c0_i32_0 : i32, i32
  }
  func.func @transform_4(%arg0: i32) -> (i32, i32) {
    %c0_i32 = arith.constant 0 : i32
    %c0_i32_0 = arith.constant 0 : i32
    %c0_i32_1 = arith.constant 0 : i32
    return %c0_i32, %c0_i32_0 : i32, i32
  }
  func.func @transform_5(%arg0: i32) -> (i32, i32) {
    %c0_i32 = arith.constant 0 : i32
    %c0_i32_0 = arith.constant 0 : i32
    return %c0_i32, %arg0 : i32, i32
  }
}

</mosaic_0001>

<llo_original>
// kernel: tpu_custom_call.1
$region0: #{tpu_custom_call.1}
  #allocation0 [shape = 'u32[]', space=smem, size = 0x4, offset = 0x4, fixed_abs, tag = 'smem constant byte address 0x4 - core index']
  #allocation1 [shape = 'u32[144,128]{1,0:T(1,128)}', space=vmem, size = 0x12000, scoped, tag = 'internal scratch']
  #allocation2 [shape = 'f32[1,1]{1,0:T(1,128)S(1)}', space=vmem, size = 0x200, scoped, tag = 'scoped memory for tpu_custom_call.1']
  %s0 = inlined_call_operand.vmem [shape: f32[2,8], index: 0, kind: input, shape index: {}]
  %s1 = inlined_call_operand.vmem [shape: f32[20,2], index: 1, kind: input, shape index: {}]
  %s2 = inlined_call_operand.vmem [shape: f32[20,1], index: 2, kind: input, shape index: {}]
  %s3 = inlined_call_operand.vmem [shape: f32[20,1], index: 3, kind: input, shape index: {}]
  %s4 = inlined_call_operand.<no memory space> [shape: f32[1,1], index: 4, kind: input, shape index: {}]
  %s5 = inlined_call_operand.hbm [shape: f32[1,8], index: 5, kind: output, shape index: {}]
  %s6 = sld [smem:[#allocation0]]
  $region30: #{tpu_custom_call.1} parent=0
    _
  %s8 = ssub.s32 1, %s6
  %s9 = scalar_select 0, %s8, %s6
  %v10 = vstv %s4
  %11 = vst [vmem:[#allocation2] sm:$0x1] %v10
  $region1: #{tpu_custom_call.1} parent=0
    #allocation3 [shape = 'u8[512]{0}', space=vmem, size = 0x400, scoped, tag = 'output window, operand 0, single buffered']
    #allocation4 [shape = 's32[1]{0}', space=sflag, size = 0x4, scoped, tag = 'scoped memory for tpu_custom_call.1']
    %12 = vsyncpa [#allocation4], 0
    // Predicated region
    $region2: #{tpu_custom_call.1} parent=1 // pred_check
      _
    $region3: #{tpu_custom_call.1} parent=1 // pred_check_branch
      %14 = sbr.rel (0) target = $region5
    $region4: #{tpu_custom_call.1} parent=1 // pred_region
      _
    $region5: #{tpu_custom_call.1} parent=1 // pred_fallthru
      _
    // Predicated region
    $region6: #{tpu_custom_call.1} parent=1 // pred_check
      _
    $region7: #{tpu_custom_call.1} parent=1 // pred_check_branch
      %16 = sbr.rel (0) target = $region9
    $region8: #{tpu_custom_call.1} parent=1 // pred_region
      _
    $region9: #{tpu_custom_call.1} parent=1 // pred_fallthru
      _
    // Predicated region
    $region10: #{tpu_custom_call.1} parent=1 // pred_check
      _
    $region11: #{tpu_custom_call.1} parent=1 // pred_check_branch
      %18 = sbr.rel (0) target = $region13
    $region12: #{tpu_custom_call.1} parent=1 // pred_region
      _
    $region13: #{tpu_custom_call.1} parent=1 // pred_fallthru
      _
    // Predicated region
    $region14: #{tpu_custom_call.1} parent=1 // pred_check
      _
    $region15: #{tpu_custom_call.1} parent=1 // pred_check_branch
      %20 = sbr.rel (0) target = $region17
    $region16: #{tpu_custom_call.1} parent=1 // pred_region
      _
    $region17: #{tpu_custom_call.1} parent=1 // pred_fallthru
      _
    // Predicated region
    $region18: #{tpu_custom_call.1} parent=1 // pred_check
      _
    $region19: #{tpu_custom_call.1} parent=1 // pred_check_branch
      %22 = sbr.rel (0) target = $region21
    $region20: #{tpu_custom_call.1} parent=1 // pred_region
      _
    $region21: #{tpu_custom_call.1} parent=1 // pred_fallthru
      _
    %v23 = vld [vmem:[%s0] sm:$0x3]
    %v24 = vld [vmem:[%s1] sm:$0xff]
    %v25 = vld [vmem:[%s1 + $0x8] sm:$0xff]
    %v26 = vld [vmem:[%s1 + $0x10] sm:$0xf]
    %v27 = vld [vmem:[%s2] sm:$0xff]
    %v28 = vld [vmem:[%s2 + $0x8] sm:$0xff]
    %v29 = vld [vmem:[%s2 + $0x10] sm:$0xf]
    %31 = vset.pattern.permute.xlu0 0
    %32 = vperm.xlu0 %31, %v24
    %v33 = vpop.permute.xlu0 %32
    %36 = vset.pattern.permute.xlu0 0
    %37 = vperm.xlu0 %36, %v25
    %v38 = vpop.permute.xlu0 %37
    %41 = vset.pattern.permute.xlu0 0
    %42 = vperm.xlu0 %41, %v26
    %v43 = vpop.permute.xlu0 %42
    %v45 = vlaneseq
    %v46 = vshrl.u32 %v45, 7
    %v47 = vsub.s32 0, %v46
    %v48 = vrot.slane %v23, %v47
    %v49 = vmul.f32 %v33, %v48
    %v50 = vmul.f32 %v38, %v48
    %v51 = vmul.f32 %v43, %v48
    %52 = vset.pattern.permute.xlu0 1
    %53 = vperm.xlu0 %52, %v24
    %v54 = vpop.permute.xlu0 %53
    %56 = vset.pattern.permute.xlu0 1
    %57 = vperm.xlu0 %56, %v25
    %v58 = vpop.permute.xlu0 %57
    %60 = vset.pattern.permute.xlu0 1
    %61 = vperm.xlu0 %60, %v26
    %v62 = vpop.permute.xlu0 %61
    %v64 = vlaneseq
    %v65 = vshrl.u32 %v64, 7
    %v66 = vsub.s32 1, %v65
    %v67 = vrot.slane %v23, %v66
    %v68 = vmul.f32 %v54, %v67
    %v69 = vmul.f32 %v58, %v67
    %v70 = vmul.f32 %v62, %v67
    %72 = vset.pattern.permute.xlu0 0
    %73 = vperm.xlu0 %72, %v27
    %v74 = vpop.permute.xlu0 %73
    %77 = vset.pattern.permute.xlu0 0
    %78 = vperm.xlu0 %77, %v28
    %v79 = vpop.permute.xlu0 %78
    %82 = vset.pattern.permute.xlu0 0
    %83 = vperm.xlu0 %82, %v29
    %v84 = vpop.permute.xlu0 %83
    %v86 = vadd.f32 %v68, %v74
    %v87 = vadd.f32 %v69, %v79
    %v88 = vadd.f32 %v70, %v84
    %v89 = vadd.f32 %v49, %v86
    %v90 = vadd.f32 %v50, %v87
    %v91 = vadd.f32 %v51, %v88
    %v92 = vmax.f32 %v89, 0.0
    %v93 = vmax.f32 %v90, 0.0
    %v94 = vmax.f32 %v91, 0.0
    %v95 = vld [vmem:[%s3] sm:$0xff]
    %v96 = vld [vmem:[%s3 + $0x8] sm:$0xff]
    %v97 = vld [vmem:[%s3 + $0x10] sm:$0xf]
    %99 = vset.pattern.permute.xlu0 0
    %100 = vperm.xlu0 %99, %v95
    %v101 = vpop.permute.xlu0 %100
    %104 = vset.pattern.permute.xlu0 0
    %105 = vperm.xlu0 %104, %v96
    %v106 = vpop.permute.xlu0 %105
    %109 = vset.pattern.permute.xlu0 0
    %110 = vperm.xlu0 %109, %v97
    %v111 = vpop.permute.xlu0 %110
    %v113 = vmul.f32 %v101, %v92
    %v114 = vmul.f32 %v106, %v93
    %v115 = vmul.f32 %v111, %v94
    %v116 = vadd.f32 %v113, %v114
    %vm117 = vcmask 1043456
    %v118 = vsel %vm117, %v115, 0.0
    %v119 = vadd.f32 %v116, %v118
    %v120 = vrot.slane %v119, 4
    %v121 = vadd.f32 %v119, %v120
    %v122 = vrot.slane %v121, 2
    %v123 = vadd.f32 %v121, %v122
    %v124 = vrot.slane %v123, 1
    %v125 = vadd.f32 %v123, %v124
    %v126 = vld [vmem:[#allocation2] sm:$0x1]
    %128 = vset.pattern.permute.xlu0 0
    %129 = vperm.xlu0 %128, %v126
    %v130 = vpop.permute.xlu0 %129
    %v132 = vlaneseq
    %v133 = vshrl.u32 %v132, 7
    %v134 = vsub.s32 0, %v133
    %v135 = vrot.slane %v130, %v134
    %v136 = vadd.f32 %v125, %v135
    %137 = vst [vmem:[#allocation3] sm:$0x1] %v136
    // Predicated region
    $region22: #{tpu_custom_call.1} parent=1 // pred_check
      _
    $region23: #{tpu_custom_call.1} parent=1 // pred_check_branch
      %139 = sbr.rel (0) target = $region25
    $region24: #{tpu_custom_call.1} parent=1 // pred_region
      %s141 = ssub.s32 16, 16
      %142 = vsyncadd [#allocation4], %s141
      %s144 = sshll.u32 [#allocation3], 4
      %s145 = int_to_ptr.vmem [resolvable:$true] %s144
      %147 = dma.vmem_to_hbm [thread:$0]  %s145, 16, %s5, [#allocation4]
    $region25: #{tpu_custom_call.1} parent=1 // pred_fallthru
      _
    // Predicated region
    $region26: #{tpu_custom_call.1} parent=1 // pred_check
      _
    $region27: #{tpu_custom_call.1} parent=1 // pred_check_branch
      %149 = sbr.rel (0) target = $region29
    $region28: #{tpu_custom_call.1} parent=1 // pred_region
      %150 = dma.done [#allocation4], 16
    $region29: #{tpu_custom_call.1} parent=1 // pred_fallthru
      _
    %151 = vsyncpa [#allocation4], 1

</llo_original>
